<compile_context>
chip_gen: v5e
topology: v5e:2x2
jax: 0.10.0
libtpu: 0.0.40
codegen_flags: <defaults>
</compile_context>

<pallas_src>
import functools

import jax
import jax.numpy as jnp
from jax.experimental import pallas as pl
from jax.experimental.pallas import tpu as pltpu


def _adaptive_max_pool_kernel(x_ref, o_ref, *, row_bins, col_bins):
    # x_ref: (LC, HB, W)  — W on the 128-lane axis, rows on sublanes.
    # o_ref: (RB, LC, PW) — RB == len(row_bins), PW == len(col_bins).
    for ri, (h0, h1) in enumerate(row_bins):
        # Row-window reduction (cross-sublane max), streamed from the ref:
        # only one (LC, h1-h0, W) window value is live at a time.
        row = jnp.max(x_ref[:, h0:h1, :], axis=1)                     # (LC, W)
        # Column-window reduction: static lane-window slices + lane max.
        cols = [jnp.max(row[:, w0:w1], axis=1, keepdims=True)         # (LC, 1)
                for (w0, w1) in col_bins]
        # One lane-dense (LC, PW) store per output row.
        o_ref[ri] = jnp.concatenate(cols, axis=-1).astype(o_ref.dtype)


def _vmem_budget():
    """Generation-aware budget for the double-buffered in+out blocks."""
    cap = 64 << 20                       # conservative fallback (v7x per-TC VMEM)
    try:
        info = pltpu.get_tpu_info()
        cap = int(getattr(info, "vmem_capacity_bytes", 0) or cap)
    except Exception:
        pass
    budget = (cap * 5) // 16             # ~40 MiB on v5e/v6e (128 MiB), ~20 MiB on v7x
    return budget, cap


def _plan_tiles(NC, H, W, PH, PW, itemsize):
    """Pick (LC channel tile, RB output-row tile, HB input-row tile).

    Constraints honored:
      * input block (LC, HB, W): HB % 8 == 0 or HB == H; W always full.
      * output block (RB, LC, PW): LC % 8 == 0 or LC == NC; PW always full.
    Preference: fits the generation-aware VMEM budget (hard), then >= 2 grid
    steps (so v7x's two TensorCores both get work), then the largest block
    (fewest grid steps / longest contiguous DMA).
    """
    divisible = (H % PH == 0) and (W % PW == 0)
    kh = H // PH

    lc_cands = {NC}                                   # == full dim: always legal
    for lc in range(8, NC + 1, 8):
        if NC % lc == 0:
            lc_cands.add(lc)

    rb_cands = {PH}                                   # HB == H: always legal
    if divisible:
        for rb in range(1, PH):
            if PH % rb == 0 and (rb * kh) % 8 == 0:   # sublane-aligned input rows
                rb_cands.add(rb)

    budget, cap = _vmem_budget()
    cands = []
    for lc in sorted(lc_cands):
        for rb in sorted(rb_cands):
            hb = rb * kh if divisible else H
            in_b = lc * hb * W * itemsize
            out_b = rb * lc * PW * itemsize
            work = 4 * lc * W * itemsize              # in-kernel row temporaries
            need = 2 * (in_b + out_b) + work          # double-buffered blocks
            steps = (NC // lc) * (PH // rb)
            cands.append(dict(lc=lc, rb=rb, hb=hb, need=need, steps=steps,
                              block=in_b + out_b))

    fit = [c for c in cands if c["need"] <= budget]
    if not fit:
        # TODO(synk): for very large H*W the minimum legal block still exceeds
        # the budget; pooling bins would need cross-block combining.  Fall back
        # to the smallest block and rely on the raised scoped-VMEM limit.
        fit = [min(cands, key=lambda c: c["need"])]
    multi = [c for c in fit if c["steps"] >= 2]
    pool = multi if multi else fit
    best = max(pool, key=lambda c: c["block"])

    vmem_limit = int(min(cap, max(32 << 20, best["need"] + (16 << 20))))
    return best, vmem_limit


def max_pool_forward(x, pool_size, single=False):
    """Pallas adaptive max pool. x: (N, C, H, W).
    Returns (pos, ori) each (N, C, ph*pw), or a single (N, C, ph*pw) if single=True."""
    N, C, H, W = x.shape
    if isinstance(pool_size, int):
        ph, pw = pool_size, pool_size
    else:
        ph, pw = pool_size
    NC = N * C

    # Native layout: (N, C, H, W) -> (N*C, H, W) is a free reshape; no transpose.
    x_flat = x.reshape(NC, H, W)

    plan, vmem_limit = _plan_tiles(NC, H, W, ph, pw, x.dtype.itemsize)
    LC, RB, HB = plan["lc"], plan["rb"], plan["hb"]
    nc_steps, row_steps = NC // LC, ph // RB

    if row_steps > 1:
        # Row tiling only happens on the divisible path: uniform local bins.
        kh = H // ph
        row_bins = tuple((ri * kh, (ri + 1) * kh) for ri in range(RB))
    else:
        # Whole H per block: global PyTorch adaptive bins floor(i*H/PH)..ceil(...).
        row_bins = tuple(((i * H) // ph, -(-((i + 1) * H) // ph)) for i in range(ph))
    col_bins = tuple(((j * W) // pw, -(-((j + 1) * W) // pw)) for j in range(pw))

    kernel = functools.partial(_adaptive_max_pool_kernel,
                               row_bins=row_bins, col_bins=col_bins)

    pooled = pl.pallas_call(
        kernel,
        out_shape=jax.ShapeDtypeStruct((ph, NC, pw), x.dtype),
        grid=(nc_steps, row_steps),
        in_specs=[pl.BlockSpec((LC, HB, W), lambda nc, r: (nc, r, 0))],
        out_specs=pl.BlockSpec((RB, LC, pw), lambda nc, r: (r, nc, 0)),
        compiler_params=pltpu.CompilerParams(
            dimension_semantics=("parallel", "parallel"),
            vmem_limit_bytes=vmem_limit),
        cost_estimate=pl.CostEstimate(
            flops=NC * H * W, transcendentals=0,
            bytes_accessed=(NC * H * W + ph * NC * pw) * x.dtype.itemsize),
    )(x_flat)

    # Tiny output relayout (ph*pw*N*C elements): (PH, NC, PW) -> (N, C, PH*PW).
    out = jnp.transpose(pooled, (1, 0, 2)).reshape(N, C, ph * pw)
    if single:
        return out
    return out, out  # ori_feature aliases pos_feature, exactly as in PyTorch


def _reference(x, ph, pw):
    """Pure-JAX adaptive max pool reference with PyTorch bin boundaries."""
    N, C, H, W = x.shape
    rows = []
    for i in range(ph):
        h0, h1 = (i * H) // ph, -(-((i + 1) * H) // ph)
        cols = []
        for j in range(pw):
            w0, w1 = (j * W) // pw, -(-((j + 1) * W) // pw)
            cols.append(jnp.max(x[:, :, h0:h1, w0:w1], axis=(2, 3)))  # (N, C)
        rows.append(jnp.stack(cols, axis=-1))                         # (N, C, pw)
    mx = jnp.stack(rows, axis=-2).reshape(N, C, ph * pw)
    return mx, mx


if __name__ == "__main__":
    key = jax.random.PRNGKey(0)
    N, C, H, W = 2, 4, 16, 16
    x = jax.random.normal(key, (N, C, H, W), dtype=jnp.float32)

    # Divisible pool size -> row-tiled path (2 grid steps even for small N*C).
    pool_size = 4
    pos, ori = max_pool_forward(x, pool_size)
    jax.block_until_ready((pos, ori))
    pos_ref, ori_ref = _reference(x, pool_size, pool_size)
    assert pos.shape == (N, C, pool_size * pool_size)
    assert ori.shape == (N, C, pool_size * pool_size)
    assert jnp.allclose(pos, pos_ref, atol=1e-6, rtol=1e-6)
    assert jnp.allclose(ori, ori_ref, atol=1e-6, rtol=1e-6)

    # Non-divisible pool size -> whole-H blocks with PyTorch floor/ceil bins,
    # plus `single` mode.
    single = max_pool_forward(x, 3, single=True)
    jax.block_until_ready(single)
    single_ref, _ = _reference(x, 3, 3)
    assert single.shape == (N, C, 9)
    assert jnp.allclose(single, single_ref, atol=1e-6, rtol=1e-6)

    # Rectangular pool size.
    rect, _ = max_pool_forward(x, (4, 2))
    jax.block_until_ready(rect)
    rect_ref, _ = _reference(x, 4, 2)
    assert rect.shape == (N, C, 8)
    assert jnp.allclose(rect, rect_ref, atol=1e-6, rtol=1e-6)

    print("KERNEL_OK")
</pallas_src>

<mosaic_0001>
module attributes {stable_mosaic.version = 11 : i64} {
  func.func @_adaptive_max_pool_kernel(%arg0: i32, %arg1: i32, %arg2: memref<8x8x16xf32, #tpu.memory_space<vmem>>, %arg3: memref<2x8x4xf32, #tpu.memory_space<vmem>>) attributes {dimension_semantics = [#tpu.dimension_semantics<parallel>, #tpu.dimension_semantics<parallel>], iteration_bounds = array<i64: 1, 2>, scalar_prefetch = 0 : i64, scratch_operands = 0 : i64, tpu.core_type = #tpu.core_type<tc>, window_params = [{transform_indices = @transform_0, window_bounds = array<i64: 8, 8, 16>}, {transform_indices = @transform_1, window_bounds = array<i64: 2, 8, 4>}]} {
    %c0 = arith.constant 0 : index
    %c0_0 = arith.constant 0 : index
    %c0_1 = arith.constant 0 : index
    %0 = vector.load %arg2[%c0, %c0_0, %c0_1] : memref<8x8x16xf32, #tpu.memory_space<vmem>>, vector<8x4x16xf32>
    %cst = arith.constant dense<0xFF800000> : vector<8x16xf32>
    %1 = vector.multi_reduction <maximumf>, %0, %cst [1] : vector<8x4x16xf32> to vector<8x16xf32>
    %2 = vector.extract_strided_slice %1 {offsets = [0, 0], sizes = [8, 4], strides = [1, 1]} : vector<8x16xf32> to vector<8x4xf32>
    %cst_2 = arith.constant dense<0xFF800000> : vector<8xf32>
    %3 = vector.multi_reduction <maximumf>, %2, %cst_2 [1] : vector<8x4xf32> to vector<8xf32>
    %4 = vector.shape_cast %3 : vector<8xf32> to vector<8x1xf32>
    %5 = vector.extract_strided_slice %1 {offsets = [0, 4], sizes = [8, 4], strides = [1, 1]} : vector<8x16xf32> to vector<8x4xf32>
    %cst_3 = arith.constant dense<0xFF800000> : vector<8xf32>
    %6 = vector.multi_reduction <maximumf>, %5, %cst_3 [1] : vector<8x4xf32> to vector<8xf32>
    %7 = vector.shape_cast %6 : vector<8xf32> to vector<8x1xf32>
    %8 = vector.extract_strided_slice %1 {offsets = [0, 8], sizes = [8, 4], strides = [1, 1]} : vector<8x16xf32> to vector<8x4xf32>
    %cst_4 = arith.constant dense<0xFF800000> : vector<8xf32>
    %9 = vector.multi_reduction <maximumf>, %8, %cst_4 [1] : vector<8x4xf32> to vector<8xf32>
    %10 = vector.shape_cast %9 : vector<8xf32> to vector<8x1xf32>
    %11 = vector.extract_strided_slice %1 {offsets = [0, 12], sizes = [8, 4], strides = [1, 1]} : vector<8x16xf32> to vector<8x4xf32>
    %cst_5 = arith.constant dense<0xFF800000> : vector<8xf32>
    %12 = vector.multi_reduction <maximumf>, %11, %cst_5 [1] : vector<8x4xf32> to vector<8xf32>
    %13 = vector.shape_cast %12 : vector<8xf32> to vector<8x1xf32>
    %14 = tpu.concatenate %4, %7, %10, %13 in 1 : vector<8x1xf32>, vector<8x1xf32>, vector<8x1xf32>, vector<8x1xf32> -> vector<8x4xf32>
    %c0_6 = arith.constant 0 : index
    %c0_7 = arith.constant 0 : index
    %c0_8 = arith.constant 0 : index
    %15 = vector.load %arg3[%c0_6, %c0_7, %c0_8] : memref<2x8x4xf32, #tpu.memory_space<vmem>>, vector<1x8x4xf32>
    %16 = vector.shape_cast %15 : vector<1x8x4xf32> to vector<8x4xf32>
    %17 = vector.shape_cast %14 : vector<8x4xf32> to vector<1x8x4xf32>
    tpu.vector_store %arg3[%c0_6, %c0_7, %c0_8], %17 {strides = array<i32>} : memref<2x8x4xf32, #tpu.memory_space<vmem>>, vector<1x8x4xf32>,
    %c0_9 = arith.constant 0 : index
    %c4 = arith.constant 4 : index
    %c0_10 = arith.constant 0 : index
    %18 = vector.load %arg2[%c0_9, %c4, %c0_10] : memref<8x8x16xf32, #tpu.memory_space<vmem>>, vector<8x4x16xf32>
    %cst_11 = arith.constant dense<0xFF800000> : vector<8x16xf32>
    %19 = vector.multi_reduction <maximumf>, %18, %cst_11 [1] : vector<8x4x16xf32> to vector<8x16xf32>
    %20 = vector.extract_strided_slice %19 {offsets = [0, 0], sizes = [8, 4], strides = [1, 1]} : vector<8x16xf32> to vector<8x4xf32>
    %cst_12 = arith.constant dense<0xFF800000> : vector<8xf32>
    %21 = vector.multi_reduction <maximumf>, %20, %cst_12 [1] : vector<8x4xf32> to vector<8xf32>
    %22 = vector.shape_cast %21 : vector<8xf32> to vector<8x1xf32>
    %23 = vector.extract_strided_slice %19 {offsets = [0, 4], sizes = [8, 4], strides = [1, 1]} : vector<8x16xf32> to vector<8x4xf32>
    %cst_13 = arith.constant dense<0xFF800000> : vector<8xf32>
    %24 = vector.multi_reduction <maximumf>, %23, %cst_13 [1] : vector<8x4xf32> to vector<8xf32>
    %25 = vector.shape_cast %24 : vector<8xf32> to vector<8x1xf32>
    %26 = vector.extract_strided_slice %19 {offsets = [0, 8], sizes = [8, 4], strides = [1, 1]} : vector<8x16xf32> to vector<8x4xf32>
    %cst_14 = arith.constant dense<0xFF800000> : vector<8xf32>
    %27 = vector.multi_reduction <maximumf>, %26, %cst_14 [1] : vector<8x4xf32> to vector<8xf32>
    %28 = vector.shape_cast %27 : vector<8xf32> to vector<8x1xf32>
    %29 = vector.extract_strided_slice %19 {offsets = [0, 12], sizes = [8, 4], strides = [1, 1]} : vector<8x16xf32> to vector<8x4xf32>
    %cst_15 = arith.constant dense<0xFF800000> : vector<8xf32>
    %30 = vector.multi_reduction <maximumf>, %29, %cst_15 [1] : vector<8x4xf32> to vector<8xf32>
    %31 = vector.shape_cast %30 : vector<8xf32> to vector<8x1xf32>
    %32 = tpu.concatenate %22, %25, %28, %31 in 1 : vector<8x1xf32>, vector<8x1xf32>, vector<8x1xf32>, vector<8x1xf32> -> vector<8x4xf32>
    %c1 = arith.constant 1 : index
    %c0_16 = arith.constant 0 : index
    %c0_17 = arith.constant 0 : index
    %33 = vector.load %arg3[%c1, %c0_16, %c0_17] : memref<2x8x4xf32, #tpu.memory_space<vmem>>, vector<1x8x4xf32>
    %34 = vector.shape_cast %33 : vector<1x8x4xf32> to vector<8x4xf32>
    %35 = vector.shape_cast %32 : vector<8x4xf32> to vector<1x8x4xf32>
    tpu.vector_store %arg3[%c1, %c0_16, %c0_17], %35 {strides = array<i32>} : memref<2x8x4xf32, #tpu.memory_space<vmem>>, vector<1x8x4xf32>,
    return
  }
  func.func @transform_0(%arg0: i32, %arg1: i32) -> (i32, i32, i32) {
    %c0_i32 = arith.constant 0 : i32
    %c0_i32_0 = arith.constant 0 : i32
    return %arg0, %arg1, %c0_i32 : i32, i32, i32
  }
  func.func @transform_1(%arg0: i32, %arg1: i32) -> (i32, i32, i32) {
    %c0_i32 = arith.constant 0 : i32
    %c0_i32_0 = arith.constant 0 : i32
    return %arg1, %arg0, %c0_i32 : i32, i32, i32
  }
}

</mosaic_0001>

<llo_original>
// kernel: tpu_custom_call.1
$region0: #{tpu_custom_call.1}
  #allocation0 [shape = 'u32[]', space=smem, size = 0x4, offset = 0x4, fixed_abs, tag = 'smem constant byte address 0x4 - core index']
  #allocation1 [shape = 'u32[72,128]{1,0:T(1,128)}', space=vmem, size = 0x9000, scoped, tag = 'internal scratch']
  %s0 = inlined_call_operand.hbm [shape: f32[8,16,16], index: 0, kind: input, shape index: {}]
  %s1 = inlined_call_operand.vmem [shape: f32[4,8,4], index: 1, kind: output, shape index: {}]
  %s2 = sld [smem:[#allocation0]]
  $region41: #{tpu_custom_call.1} parent=0
    _
  %s4 = ssub.s32 1, %s2
  %s5 = scalar_select 0, %s4, %s2
  $region1: #{tpu_custom_call.1} parent=0
    #allocation2 [shape = 'u8[65536]{0}', space=vmem, size = 0x10000, scoped, tag = 'input window, operand 0']
    #allocation3 [shape = 's32[2]{0}', space=sflag, size = 0x8, scoped, tag = 'scoped memory for tpu_custom_call.1']
    %6 = vsyncpa [#allocation3], 0
    %s7 = scalar_lea.sflag [#allocation3], 1
    %8 = vsyncpa %s7, 0
    loop: start=0, step=1, limit=4
    $region2: #{tpu_custom_call.1} parent=1 // loop_pre_header
      _
    $region3: #{tpu_custom_call.1} parent=1 // loop_header
      %s10 = sphi 0, %s14
      %p11 = scmp.ge.s32.totalorder %s10, 4
      %s17 = sphi 0, %s29
      %s18 = sphi 0, %s25
      %s19 = sphi 0, %s17
      %s20 = sphi 0, %s18
      %s21 = sphi 0, %s19
      %s22 = sphi 0, %s20
      %s34 = sphi 0, %s36
      %s37 = sphi 0, %s34
      %s38 = sphi 0, %s37
      %s54 = sphi 0, %s38
      %s62 = sphi 0, %s64
      %s65 = sphi 0, %s62
      %s66 = sphi 0, %s65
      %s82 = sphi 0, %s66
    $region4: #{tpu_custom_call.1} parent=1 // loop_header_branch
      %13 = sbr.rel (%p11) target = $region8
    $region5: #{tpu_custom_call.1} parent=1 // loop_body
      %s15 = ssub.s32 %s10, 1
      %s16 = ssub.s32 %s10, 2
      %s23 = sadd.s32 1, %s18
      %p24 = scmp.ge.s32.totalorder %s23, 2
      %s25 = scalar_select %p24, 0, %s23
      %s26 = sadd.s32 1, %s17
      %s27 = scalar_select %p24, %s26, %s17
      %p28 = scmp.ge.s32.totalorder %s27, 1
      %s29 = scalar_select %p28, 0, %s27
      %s30 = ssub.s32 %s17, %s29
      %s31 = ssub.s32 %s18, %s25
      %s32 = sor.u32 %s30, %s31
      %p33 = scmp.eq.s32.totalorder %s32, 0
      %s35 = sadd.s32 %s34, 1
      %s36 = scalar_select %p33, %s34, %s35
      %p39 = pneg %p33
      %p40 = scmp.eq.s32.totalorder %s10, 1
      %p41 = por %p39, %p40
      %p42 = scmp.ne.s32.totalorder %s34, %s37
      %p43 = scmp.eq.s32.totalorder %s10, 0
      %p44 = por %p42, %p43
      %p45 = scmp.ne.s32.totalorder %s34, %s37
      %p46 = scmp.eq.s32.totalorder %s15, 1
      %p47 = por %p45, %p46
      %p48 = scmp.ne.s32.totalorder %s37, %s38
      %p49 = scmp.eq.s32.totalorder %s15, 0
      %p50 = por %p48, %p49
      %p51 = scmp.ne.s32.totalorder %s37, %s38
      %p52 = scmp.eq.s32.totalorder %s16, 1
      %p53 = por %p51, %p52
      %p55 = scmp.ne.s32.totalorder %s38, %s54
      %p56 = scmp.eq.s32.totalorder %s16, 0
      %p57 = por %p55, %p56
      %s58 = ssub.s32 %s18, %s25
      %s59 = ssub.s32 %s17, %s29
      %s60 = sor.u32 %s58, %s59
      %p61 = scmp.eq.s32.totalorder %s60, 0
      %s63 = sadd.s32 %s62, 1
      %s64 = scalar_select %p61, %s62, %s63
      %p67 = pneg %p61
      %p68 = scmp.eq.s32.totalorder %s10, 1
      %p69 = por %p67, %p68
      %p70 = scmp.ne.s32.totalorder %s62, %s65
      %p71 = scmp.eq.s32.totalorder %s10, 0
      %p72 = por %p70, %p71
      %p73 = scmp.ne.s32.totalorder %s62, %s65
      %p74 = scmp.eq.s32.totalorder %s15, 1
      %p75 = por %p73, %p74
      %p76 = scmp.ne.s32.totalorder %s65, %s66
      %p77 = scmp.eq.s32.totalorder %s15, 0
      %p78 = por %p76, %p77
      %p79 = scmp.ne.s32.totalorder %s65, %s66
      %p80 = scmp.eq.s32.totalorder %s16, 1
      %p81 = por %p79, %p80
      %p83 = scmp.ne.s32.totalorder %s66, %s82
      %p84 = scmp.eq.s32.totalorder %s16, 0
      %p85 = por %p83, %p84
      %p86 = scmp.le.s32.totalorder 1, %s10
      %p87 = scmp.lt.s32.totalorder %s10, 3
      %p88 = pnand %p86, %p87
      %p89 = pneg %p88
      // Predicated region
      $region9: #{tpu_custom_call.1} parent=5 // pred_check
        _
      $region10: #{tpu_custom_call.1} parent=5 // pred_check_branch
        %91 = sbr.rel (%p88) target = $region12
      $region11: #{tpu_custom_call.1} parent=5 // pred_region
        %s92 = ssub.s32 %s10, 1
      $region12: #{tpu_custom_call.1} parent=5 // pred_fallthru
        _
      %p93 = scmp.lt.s32.totalorder %s10, 2
      // Predicated region
      $region13: #{tpu_custom_call.1} parent=5 // pred_check
        %p94 = pneg %p93
      $region14: #{tpu_custom_call.1} parent=5 // pred_check_branch
        %96 = sbr.rel (%p94) target = $region16
      $region15: #{tpu_custom_call.1} parent=5 // pred_region
        // Predicated region
        $region17: #{tpu_custom_call.1} parent=15 // pred_check
          %p97 = pneg %p44
        $region18: #{tpu_custom_call.1} parent=15 // pred_check_branch
          %99 = sbr.rel (%p97) target = $region20
        $region19: #{tpu_custom_call.1} parent=15 // pred_region
          %s100 = sand.u32 %s34, 1
          %s101 = scalar_lea.sflag [#allocation3], %s100
          %s102 = sand.u32 %s34, 1
          %s103 = smul.addr %s102, 64
          %s104 = scalar_lea.vmem [#allocation2], %s103
          %s105 = smul.u32 8, %s17
          %107 = vsyncadd %s101, 0
          %s108 = smul.addr %s105, 2
          %s109 = sadd.s32 %s18, %s108
          %s110 = smul.addr %s109, 8
          %s111 = scalar_lea.hbm %s0, %s110
          %s112 = sshll.u32 %s111, 4
          %s113 = int_to_ptr.hbm [resolvable:$true] %s112
          %s114 = sshll.u32 %s104, 4
          %s115 = int_to_ptr.vmem [resolvable:$true] %s114
          %120 = dma.hbm_to_vmem [thread:$0]  %s113, 1024, %s115, %s101, 256, 128, 8
        $region20: #{tpu_custom_call.1} parent=15 // pred_fallthru
          _
      $region16: #{tpu_custom_call.1} parent=5 // pred_fallthru
        _
      %p121 = scmp.le.s32.totalorder 1, %s10
      %p122 = scmp.lt.s32.totalorder %s10, 3
      %p123 = pnand %p121, %p122
      %p124 = pneg %p123
      // Predicated region
      $region21: #{tpu_custom_call.1} parent=5 // pred_check
        _
      $region22: #{tpu_custom_call.1} parent=5 // pred_check_branch
        %126 = sbr.rel (%p123) target = $region24
      $region23: #{tpu_custom_call.1} parent=5 // pred_region
        %s127 = ssub.s32 %s10, 1
        %s128 = sand.u32 %s37, 1
        %s129 = scalar_lea.sflag [#allocation3], %s128
        %s130 = sand.u32 %s37, 1
        %s131 = smul.addr %s130, 64
        %s132 = scalar_lea.vmem [#allocation2], %s131
        // Predicated region
        $region25: #{tpu_custom_call.1} parent=23 // pred_check
          %p133 = pneg %p50
        $region26: #{tpu_custom_call.1} parent=23 // pred_check_branch
          %135 = sbr.rel (%p133) target = $region28
        $region27: #{tpu_custom_call.1} parent=23 // pred_region
          %137 = dma.done %s129, 1024
        $region28: #{tpu_custom_call.1} parent=23 // pred_fallthru
          _
        %s138 = sand.u32 %s37, 1
        %s139 = scalar_lea.sflag [#allocation3], %s138
        %s140 = sand.u32 %s37, 1
        %s141 = smul.addr %s140, 64
        %s142 = scalar_lea.vmem [#allocation2], %s141
        %p143 = pneg %p50
        %p144 = pneg %p47
        %p145 = pneg %p78
        %p146 = pneg %p75
        %s147 = smul.u32 2, %s20
        %p148 = scmp.lt.s32.totalorder %s147, 3
        %s149 = scalar_select %p148, %s147, 3
        %p150 = scmp.lt.s32.totalorder %s19, 0
        %s151 = scalar_select %p150, %s19, 0
        %s152 = sadd.s32 %s151, %s149
        %s153 = smul.addr %s152, 8
        %s154 = scalar_lea.vmem %s1, %s153
        %s155 = smul.u32 8, %s19
        %s156 = smul.u32 2, %s20
        %p157 = scmp.lt.s32.totalorder %s156, 3
        %s158 = scalar_select %p157, %s156, 3
        %p159 = scmp.lt.s32.totalorder %s19, 0
        %s160 = scalar_select %p159, %s19, 0
        %s161 = sadd.s32 %s160, %s158
        %s162 = smul.addr %s161, 8
        %s163 = scalar_lea.vmem %s1, %s162
        %s164 = smul.u32 2, %s20
        %v165 = vld [vmem:[%s132] sm:$0xf]
        %v166 = vld [vmem:[%s132 + $0x8] sm:$0xf]
        %v167 = vld [vmem:[%s132 + $0x10] sm:$0xf]
        %v168 = vld [vmem:[%s132 + $0x18] sm:$0xf]
        %v169 = vld [vmem:[%s132 + $0x20] sm:$0xf]
        %v170 = vld [vmem:[%s132 + $0x28] sm:$0xf]
        %v171 = vld [vmem:[%s132 + $0x30] sm:$0xf]
        %v172 = vld [vmem:[%s132 + $0x38] sm:$0xf]
        %vm173 = vcmask 125952
        %v174 = vsel %vm173, %v165, -inf
        %v175 = vrot.slane %v174, 4
        %v176 = vmax.f32 %v174, %v175
        %v177 = vrot.slane %v176, 2
        %v178 = vmax.f32 %v176, %v177
        %v179 = vrot.slane %v178, 1
        %v180 = vmax.f32 %v178, %v179
        %v181 = vsel %vm173, %v166, -inf
        %v182 = vrot.slane %v181, 4
        %v183 = vmax.f32 %v181, %v182
        %v184 = vrot.slane %v183, 2
        %v185 = vmax.f32 %v183, %v184
        %v186 = vrot.slane %v185, 1
        %v187 = vmax.f32 %v185, %v186
        %v188 = vsel %vm173, %v167, -inf
        %v189 = vrot.slane %v188, 4
        %v190 = vmax.f32 %v188, %v189
        %v191 = vrot.slane %v190, 2
        %v192 = vmax.f32 %v190, %v191
        %v193 = vrot.slane %v192, 1
        %v194 = vmax.f32 %v192, %v193
        %v195 = vsel %vm173, %v168, -inf
        %v196 = vrot.slane %v195, 4
        %v197 = vmax.f32 %v195, %v196
        %v198 = vrot.slane %v197, 2
        %v199 = vmax.f32 %v197, %v198
        %v200 = vrot.slane %v199, 1
        %v201 = vmax.f32 %v199, %v200
        %v202 = vsel %vm173, %v169, -inf
        %v203 = vrot.slane %v202, 4
        %v204 = vmax.f32 %v202, %v203
        %v205 = vrot.slane %v204, 2
        %v206 = vmax.f32 %v204, %v205
        %v207 = vrot.slane %v206, 1
        %v208 = vmax.f32 %v206, %v207
        %v209 = vsel %vm173, %v170, -inf
        %v210 = vrot.slane %v209, 4
        %v211 = vmax.f32 %v209, %v210
        %v212 = vrot.slane %v211, 2
        %v213 = vmax.f32 %v211, %v212
        %v214 = vrot.slane %v213, 1
        %v215 = vmax.f32 %v213, %v214
        %v216 = vsel %vm173, %v171, -inf
        %v217 = vrot.slane %v216, 4
        %v218 = vmax.f32 %v216, %v217
        %v219 = vrot.slane %v218, 2
        %v220 = vmax.f32 %v218, %v219
        %v221 = vrot.slane %v220, 1
        %v222 = vmax.f32 %v220, %v221
        %v223 = vsel %vm173, %v172, -inf
        %v224 = vrot.slane %v223, 4
        %v225 = vmax.f32 %v223, %v224
        %v226 = vrot.slane %v225, 2
        %v227 = vmax.f32 %v225, %v226
        %v228 = vrot.slane %v227, 1
        %v229 = vmax.f32 %v227, %v228
        %vm238 = vcmask 1041409
        %v239 = vsel %vm238, %v187, %v180
        %vm240 = vcmask 1042434
        %v241 = vsel %vm240, %v194, %v239
        %vm242 = vcmask 1043459
        %v243 = vsel %vm242, %v201, %v241
        %vm244 = vcmask 1044484
        %v245 = vsel %vm244, %v208, %v243
        %vm246 = vcmask 1045509
        %v247 = vsel %vm246, %v215, %v245
        %vm248 = vcmask 1046534
        %v249 = vsel %vm248, %v222, %v247
        %vm250 = vcmask 1047559
        %v251 = vsel %vm250, %v229, %v249
        %vm253 = vcmask 31744
        %v254 = vsel %vm253, %v251, -inf
        %255 = vmax.xlane.f32.xlu0 %v254
        %v256 = vpop.xlane.xlu0 %255
        %vm257 = vcmask 64544
        %v258 = vsel %vm257, %v251, -inf
        %259 = vmax.xlane.f32.xlu0 %v258
        %v260 = vpop.xlane.xlu0 %259
        %vm261 = vcmask 97344
        %v262 = vsel %vm261, %v251, -inf
        %263 = vmax.xlane.f32.xlu0 %v262
        %v264 = vpop.xlane.xlu0 %263
        %vm265 = vcmask 130144
        %v266 = vsel %vm265, %v251, -inf
        %267 = vmax.xlane.f32.xlu0 %v266
        %v268 = vpop.xlane.xlu0 %267
        %vm269 = vcmask 7168
        %v270 = vsel %vm269, %v256, %v260
        %vm271 = vcmask 15360
        %v272 = vsel %vm271, %v270, %v264
        %vm273 = vcmask 23552
        %v274 = vsel %vm273, %v272, %v268
        %275 = vst.msk [vmem:[%s163] sm:$0xff] %vm253, %v274
        %v276 = vld [vmem:[%s132 + $0x4] sm:$0xf]
        %v277 = vld [vmem:[%s132 + $0xc] sm:$0xf]
        %v278 = vld [vmem:[%s132 + $0x14] sm:$0xf]
        %v279 = vld [vmem:[%s132 + $0x1c] sm:$0xf]
        %v280 = vld [vmem:[%s132 + $0x24] sm:$0xf]
        %v281 = vld [vmem:[%s132 + $0x2c] sm:$0xf]
        %v282 = vld [vmem:[%s132 + $0x34] sm:$0xf]
        %v283 = vld [vmem:[%s132 + $0x3c] sm:$0xf]
        %v284 = vsel %vm173, %v276, -inf
        %v285 = vrot.slane %v284, 4
        %v286 = vmax.f32 %v284, %v285
        %v287 = vrot.slane %v286, 2
        %v288 = vmax.f32 %v286, %v287
        %v289 = vrot.slane %v288, 1
        %v290 = vmax.f32 %v288, %v289
        %v291 = vsel %vm173, %v277, -inf
        %v292 = vrot.slane %v291, 4
        %v293 = vmax.f32 %v291, %v292
        %v294 = vrot.slane %v293, 2
        %v295 = vmax.f32 %v293, %v294
        %v296 = vrot.slane %v295, 1
        %v297 = vmax.f32 %v295, %v296
        %v298 = vsel %vm173, %v278, -inf
        %v299 = vrot.slane %v298, 4
        %v300 = vmax.f32 %v298, %v299
        %v301 = vrot.slane %v300, 2
        %v302 = vmax.f32 %v300, %v301
        %v303 = vrot.slane %v302, 1
        %v304 = vmax.f32 %v302, %v303
        %v305 = vsel %vm173, %v279, -inf
        %v306 = vrot.slane %v305, 4
        %v307 = vmax.f32 %v305, %v306
        %v308 = vrot.slane %v307, 2
        %v309 = vmax.f32 %v307, %v308
        %v310 = vrot.slane %v309, 1
        %v311 = vmax.f32 %v309, %v310
        %v312 = vsel %vm173, %v280, -inf
        %v313 = vrot.slane %v312, 4
        %v314 = vmax.f32 %v312, %v313
        %v315 = vrot.slane %v314, 2
        %v316 = vmax.f32 %v314, %v315
        %v317 = vrot.slane %v316, 1
        %v318 = vmax.f32 %v316, %v317
        %v319 = vsel %vm173, %v281, -inf
        %v320 = vrot.slane %v319, 4
        %v321 = vmax.f32 %v319, %v320
        %v322 = vrot.slane %v321, 2
        %v323 = vmax.f32 %v321, %v322
        %v324 = vrot.slane %v323, 1
        %v325 = vmax.f32 %v323, %v324
        %v326 = vsel %vm173, %v282, -inf
        %v327 = vrot.slane %v326, 4
        %v328 = vmax.f32 %v326, %v327
        %v329 = vrot.slane %v328, 2
        %v330 = vmax.f32 %v328, %v329
        %v331 = vrot.slane %v330, 1
        %v332 = vmax.f32 %v330, %v331
        %v333 = vsel %vm173, %v283, -inf
        %v334 = vrot.slane %v333, 4
        %v335 = vmax.f32 %v333, %v334
        %v336 = vrot.slane %v335, 2
        %v337 = vmax.f32 %v335, %v336
        %v338 = vrot.slane %v337, 1
        %v339 = vmax.f32 %v337, %v338
        %v348 = vsel %vm238, %v297, %v290
        %v349 = vsel %vm240, %v304, %v348
        %v350 = vsel %vm242, %v311, %v349
        %v351 = vsel %vm244, %v318, %v350
        %v352 = vsel %vm246, %v325, %v351
        %v353 = vsel %vm248, %v332, %v352
        %v354 = vsel %vm250, %v339, %v353
        %v356 = vsel %vm253, %v354, -inf
        %357 = vmax.xlane.f32.xlu0 %v356
        %v358 = vpop.xlane.xlu0 %357
        %v359 = vsel %vm257, %v354, -inf
        %360 = vmax.xlane.f32.xlu0 %v359
        %v361 = vpop.xlane.xlu0 %360
        %v362 = vsel %vm261, %v354, -inf
        %363 = vmax.xlane.f32.xlu0 %v362
        %v364 = vpop.xlane.xlu0 %363
        %v365 = vsel %vm265, %v354, -inf
        %366 = vmax.xlane.f32.xlu0 %v365
        %v367 = vpop.xlane.xlu0 %366
        %v368 = vsel %vm269, %v358, %v361
        %v369 = vsel %vm271, %v368, %v364
        %v370 = vsel %vm273, %v369, %v367
        %s371 = scalar_lea.vmem %s163, 8
        %372 = vst.msk [vmem:[%s371] sm:$0xff] %vm253, %v370
        %s373 = smul.u32 2, %s20
        %p374 = scmp.lt.s32.totalorder %s373, 3
        %s375 = scalar_select %p374, %s373, 3
        %p376 = scmp.lt.s32.totalorder %s19, 0
        %s377 = scalar_select %p376, %s19, 0
        %s378 = sadd.s32 %s377, %s375
        %s379 = smul.addr %s378, 8
        %s380 = scalar_lea.vmem %s1, %s379
        // Predicated region
        $region29: #{tpu_custom_call.1} parent=23 // pred_check
          %p381 = pneg %p75
        $region30: #{tpu_custom_call.1} parent=23 // pred_check_branch
          %383 = sbr.rel (%p381) target = $region32
        $region31: #{tpu_custom_call.1} parent=23 // pred_region
          %s384 = smul.u32 2, %s20
        $region32: #{tpu_custom_call.1} parent=23 // pred_fallthru
          _
      $region24: #{tpu_custom_call.1} parent=5 // pred_fallthru
        _
      %p385 = scmp.le.s32.totalorder 2, %s10
      // Predicated region
      $region33: #{tpu_custom_call.1} parent=5 // pred_check
        %p386 = pneg %p385
      $region34: #{tpu_custom_call.1} parent=5 // pred_check_branch
        %388 = sbr.rel (%p386) target = $region36
      $region35: #{tpu_custom_call.1} parent=5 // pred_region
        %s389 = ssub.s32 %s10, 2
        // Predicated region
        $region37: #{tpu_custom_call.1} parent=35 // pred_check
          %p390 = pneg %p81
        $region38: #{tpu_custom_call.1} parent=35 // pred_check_branch
          %392 = sbr.rel (%p390) target = $region40
        $region39: #{tpu_custom_call.1} parent=35 // pred_region
          %s393 = smul.u32 2, %s22
          %p394 = scmp.lt.s32.totalorder %s393, 3
          %s395 = scalar_select %p394, %s393, 3
          %p396 = scmp.lt.s32.totalorder %s21, 0
          %s397 = scalar_select %p396, %s21, 0
          %s398 = sadd.s32 %s397, %s395
          %s399 = smul.addr %s398, 8
          %s400 = scalar_lea.vmem %s1, %s399
        $region40: #{tpu_custom_call.1} parent=35 // pred_fallthru
          _
      $region36: #{tpu_custom_call.1} parent=5 // pred_fallthru
        _
    $region6: #{tpu_custom_call.1} parent=1 // loop_footer
      %s14 = sadd.s32 1, %s10
    $region7: #{tpu_custom_call.1} parent=1 // loop_footer_branch
      %9 = sbr.rel target = $region3
    $region8: #{tpu_custom_call.1} parent=1 // loop_exit
      _
    %401 = vsyncpa [#allocation3], 1
    %s402 = scalar_lea.sflag [#allocation3], 1
    %403 = vsyncpa %s402, 1

</llo_original>
